<compile_context>
chip_gen: v5e
topology: v5e:2x2
jax: 0.10.0
libtpu: 0.0.40
codegen_flags: <defaults>
</compile_context>

<pallas_src>
import functools

import jax
import jax.numpy as jnp
from jax.experimental import pallas as pl
from jax.experimental.pallas import tpu as pltpu


def _round_up(x, m):
    return (x + m - 1) // m * m


def _pick_batch_tile(B, D_pad):
    """Batch-tile rows: multiple of 8; >= 2 grid steps when B > 8 (so the
    'parallel' grid axis shards across v7x's two TensorCores); minimal batch
    padding; capped so double-buffered (f32 in + bf16 out) tiles stay modest."""
    cap = max(8, min(512, ((12 << 20) // (12 * D_pad)) // 8 * 8))
    if B <= 8:
        return 8
    hi = max(8, min(cap, _round_up(-(-B // 2), 8)))   # forces >= 2 grid steps
    best_tb, best_key = 8, None
    for tb in range(8, hi + 1, 8):
        key = (_round_up(B, tb) - B, -tb)             # (pad waste, prefer bigger)
        if best_key is None or key < best_key:
            best_key, best_tb = key, tb
    return best_tb


def _make_kernel(num_layers, bottleneck_idx):
    """Full encoder+decoder MLP chain for one batch tile; params VMEM-resident."""

    def kernel(*refs):
        x_ref = refs[0]
        out_ref = refs[-1]
        p = refs[1:-1]

        # In-kernel f32 -> bf16 cast: reads 4 B/elt once instead of an extra
        # wrapper cast pass (4 B read + 2 B write + 2 B kernel re-read).
        h = x_ref[...].astype(jnp.bfloat16)

        for i in range(num_layers):               # unrolled at trace time
            w_ref, b_ref = p[2 * i], p[2 * i + 1]
            # bf16 operands on the MXU, f32 accumulation, f32 bias/ReLU on VPU.
            acc = jnp.dot(h, w_ref[...], preferred_element_type=jnp.float32)
            acc = acc + b_ref[...]
            last = i == num_layers - 1
            if i != bottleneck_idx and not last:
                acc = jnp.maximum(acc, 0.0)
            if last:
                out_ref[...] = acc.astype(out_ref.dtype)   # bf16 store
            else:
                h = acc.astype(jnp.bfloat16)

    return kernel


@functools.partial(jax.jit, static_argnames=("input_size",))
def nn_autoencoder_forward(x_nchw, params, *, input_size):
    """x_nchw: (B, 1, S, S) float32.  params: list of (W_(in,out), b_(1,out)).

    Returns (B, 1, S, S) bfloat16 (all intermediates are bf16 anyway; cast to
    f32 downstream if required)."""
    B = x_nchw.shape[0]
    D = input_size * input_size
    D_pad = _round_up(D, 128)          # lane-dense first/last matmuls + stores

    x_flat = x_nchw.reshape(B, D)      # stays f32; cast happens in the kernel

    TB = _pick_batch_tile(B, D_pad)
    B_pad = _round_up(B, TB)
    pad_r, pad_c = B_pad - B, D_pad - D
    if pad_r or pad_c:
        x_flat = jnp.pad(x_flat, ((0, pad_r), (0, pad_c)))
    grid = (B_pad // TB,)

    # ---- param prep: pad lane-sparse dims, bf16 weights / f32 biases ----
    n = len(params)
    bottleneck = n // 2 - 1                      # encoder's last layer (no ReLU)
    n_components = params[bottleneck][0].shape[1]
    n_pad = _round_up(max(n_components, 128), 128)

    flat_params = []
    in_specs = [pl.BlockSpec((TB, D_pad), lambda i: (i, 0))]
    for i, (w, b) in enumerate(params):
        w = w.astype(jnp.float32)
        b = b.astype(jnp.float32).reshape(1, -1)
        if i == 0 and pad_c:                     # pad flattened-input rows (zeros)
            w = jnp.pad(w, ((0, pad_c), (0, 0)))
        if i == bottleneck and n_pad != n_components:    # pad latent cols (zeros)
            w = jnp.pad(w, ((0, 0), (0, n_pad - w.shape[1])))
            b = jnp.pad(b, ((0, 0), (0, n_pad - b.shape[1])))
        if i == bottleneck + 1 and n_pad != n_components:  # pad latent rows (zeros)
            w = jnp.pad(w, ((0, n_pad - w.shape[0]), (0, 0)))
        if i == n - 1 and pad_c:                 # pad flattened-output cols (zeros)
            w = jnp.pad(w, ((0, 0), (0, pad_c)))
            b = jnp.pad(b, ((0, 0), (0, pad_c)))
        w = w.astype(jnp.bfloat16)               # bf16 MXU operands
        flat_params.extend([w, b])
        # Constant block index -> param stays VMEM-resident across grid steps.
        # (Default double-buffering of these residents costs < 1 MiB at these
        #  sizes, so a pipeline_mode override is not worth the risk here.)
        in_specs.append(pl.BlockSpec(w.shape, lambda i: (0, 0)))
        in_specs.append(pl.BlockSpec(b.shape, lambda i: (0, 0)))

    kernel = _make_kernel(n, bottleneck)

    out_flat = pl.pallas_call(
        kernel,
        out_shape=jax.ShapeDtypeStruct((B_pad, D_pad), jnp.bfloat16),
        grid=grid,
        in_specs=in_specs,
        out_specs=pl.BlockSpec((TB, D_pad), lambda i: (i, 0)),
        compiler_params=pltpu.CompilerParams(
            dimension_semantics=("parallel",)),
    )(x_flat, *flat_params)

    return out_flat[:B, :D].reshape(B, 1, input_size, input_size)


def init_params(key, input_size, n_components, layers):
    """Deterministic params mimicking nn.Linear's U(-1/sqrt(fan_in), +) init.

    Weights stored pre-transposed as (in, out); biases as (1, out), all f32."""
    dims = [input_size * input_size] + list(layers) + [n_components] \
         + list(layers[::-1]) + [input_size * input_size]
    params = []
    for fan_in, fan_out in zip(dims[:-1], dims[1:]):
        key, kw, kb = jax.random.split(key, 3)
        bound = 1.0 / jnp.sqrt(fan_in)
        w = jax.random.uniform(kw, (fan_in, fan_out), jnp.float32, -bound, bound)
        b = jax.random.uniform(kb, (1, fan_out), jnp.float32, -bound, bound)
        params.append((w, b))
    return params


def reference_forward(x_nchw, params, input_size):
    """Pure f32 JAX reference matching the PyTorch forward."""
    B = x_nchw.shape[0]
    h = x_nchw.reshape(B, input_size * input_size)
    n = len(params)
    for i, (w, b) in enumerate(params):
        h = h @ w + b
        # ReLU after every layer except the encoder bottleneck (idx n//2 - 1)
        # and the final decoder output (idx n - 1).
        if i != n // 2 - 1 and i != n - 1:
            h = jnp.maximum(h, 0.0)
    return h.reshape(B, 1, input_size, input_size)


if __name__ == "__main__":
    # Small, MLP-consistent shapes: input_size=16 -> flattened 256 features.
    INPUT_SIZE = 16
    N_COMPONENTS = 8
    LAYERS = [256, 128]
    BATCH = 24          # > 8 -> multi-step batch grid (pipelining / megacore path)

    key = jax.random.PRNGKey(0)
    key, kx = jax.random.split(key)
    x = jax.random.normal(kx, (BATCH, 1, INPUT_SIZE, INPUT_SIZE), jnp.float32)

    params = init_params(key, INPUT_SIZE, N_COMPONENTS, LAYERS)

    out = nn_autoencoder_forward(x, params, input_size=INPUT_SIZE)
    out = jax.block_until_ready(out)

    ref = reference_forward(x, params, INPUT_SIZE)
    assert out.shape == (BATCH, 1, INPUT_SIZE, INPUT_SIZE), out.shape
    assert out.dtype == jnp.bfloat16, out.dtype
    # bf16 MXU operands / bf16 output with f32 accumulation -> loosened tolerance.
    assert jnp.allclose(out.astype(jnp.float32), ref, atol=5e-2, rtol=5e-2), \
        "mismatch vs reference"

    print("KERNEL_OK")
</pallas_src>

<mosaic_0001>
module attributes {stable_mosaic.version = 11 : i64} {
  func.func @kernel(%arg0: i32, %arg1: memref<8x256xf32, #tpu.memory_space<vmem>>, %arg2: memref<256x256xbf16, #tpu.memory_space<vmem>>, %arg3: memref<1x256xf32, #tpu.memory_space<vmem>>, %arg4: memref<256x128xbf16, #tpu.memory_space<vmem>>, %arg5: memref<1x128xf32, #tpu.memory_space<vmem>>, %arg6: memref<128x128xbf16, #tpu.memory_space<vmem>>, %arg7: memref<1x128xf32, #tpu.memory_space<vmem>>, %arg8: memref<128x128xbf16, #tpu.memory_space<vmem>>, %arg9: memref<1x128xf32, #tpu.memory_space<vmem>>, %arg10: memref<128x256xbf16, #tpu.memory_space<vmem>>, %arg11: memref<1x256xf32, #tpu.memory_space<vmem>>, %arg12: memref<256x256xbf16, #tpu.memory_space<vmem>>, %arg13: memref<1x256xf32, #tpu.memory_space<vmem>>, %arg14: memref<8x256xbf16, #tpu.memory_space<vmem>>) attributes {dimension_semantics = [#tpu.dimension_semantics<parallel>], iteration_bounds = array<i64: 3>, scalar_prefetch = 0 : i64, scratch_operands = 0 : i64, tpu.core_type = #tpu.core_type<tc>, window_params = [{transform_indices = @transform_0, window_bounds = array<i64: 8, 256>}, {pipeline_mode = #tpu.pipeline_mode<synchronous>, transform_indices = @transform_1, window_bounds = array<i64: 256, 256>}, {pipeline_mode = #tpu.pipeline_mode<synchronous>, transform_indices = @transform_2, window_bounds = array<i64: 1, 256>}, {pipeline_mode = #tpu.pipeline_mode<synchronous>, transform_indices = @transform_3, window_bounds = array<i64: 256, 128>}, {pipeline_mode = #tpu.pipeline_mode<synchronous>, transform_indices = @transform_4, window_bounds = array<i64: 1, 128>}, {pipeline_mode = #tpu.pipeline_mode<synchronous>, transform_indices = @transform_5, window_bounds = array<i64: 128, 128>}, {pipeline_mode = #tpu.pipeline_mode<synchronous>, transform_indices = @transform_6, window_bounds = array<i64: 1, 128>}, {pipeline_mode = #tpu.pipeline_mode<synchronous>, transform_indices = @transform_7, window_bounds = array<i64: 128, 128>}, {pipeline_mode = #tpu.pipeline_mode<synchronous>, transform_indices = @transform_8, window_bounds = array<i64: 1, 128>}, {pipeline_mode = #tpu.pipeline_mode<synchronous>, transform_indices = @transform_9, window_bounds = array<i64: 128, 256>}, {pipeline_mode = #tpu.pipeline_mode<synchronous>, transform_indices = @transform_10, window_bounds = array<i64: 1, 256>}, {pipeline_mode = #tpu.pipeline_mode<synchronous>, transform_indices = @transform_11, window_bounds = array<i64: 256, 256>}, {pipeline_mode = #tpu.pipeline_mode<synchronous>, transform_indices = @transform_12, window_bounds = array<i64: 1, 256>}, {transform_indices = @transform_13, window_bounds = array<i64: 8, 256>}]} {
    %c0 = arith.constant 0 : index
    %c0_0 = arith.constant 0 : index
    %0 = vector.load %arg1[%c0, %c0_0] : memref<8x256xf32, #tpu.memory_space<vmem>>, vector<8x256xf32>
    %1 = arith.truncf %0 : vector<8x256xf32> to vector<8x256xbf16>
    %c0_1 = arith.constant 0 : index
    %c0_2 = arith.constant 0 : index
    %2 = vector.load %arg2[%c0_1, %c0_2] : memref<256x256xbf16, #tpu.memory_space<vmem>>, vector<256x256xbf16>
    %cst = arith.constant dense<0.000000e+00> : vector<8x256xf32>
    %3 = tpu.matmul %1, %2, %cst {dimension_numbers = #tpu.dot_dimension_numbers<[1], [0], [0], [1], [0, 0, 1, 1], [], []>} : vector<8x256xbf16>, vector<256x256xbf16>, vector<8x256xf32> -> vector<8x256xf32>
    %c0_3 = arith.constant 0 : index
    %c0_4 = arith.constant 0 : index
    %4 = vector.load %arg3[%c0_3, %c0_4] : memref<1x256xf32, #tpu.memory_space<vmem>>, vector<1x256xf32>
    %5 = vector.broadcast %4 : vector<1x256xf32> to vector<8x256xf32>
    %6 = arith.addf %3, %5 : vector<8x256xf32>
    %cst_5 = arith.constant 0.000000e+00 : f32
    %7 = vector.broadcast %cst_5 : f32 to vector<8x256xf32>
    %8 = arith.maximumf %6, %7 : vector<8x256xf32>
    %9 = arith.truncf %8 : vector<8x256xf32> to vector<8x256xbf16>
    %c0_6 = arith.constant 0 : index
    %c0_7 = arith.constant 0 : index
    %10 = vector.load %arg4[%c0_6, %c0_7] : memref<256x128xbf16, #tpu.memory_space<vmem>>, vector<256x128xbf16>
    %cst_8 = arith.constant dense<0.000000e+00> : vector<8x128xf32>
    %11 = tpu.matmul %9, %10, %cst_8 {dimension_numbers = #tpu.dot_dimension_numbers<[1], [0], [0], [1], [0, 0, 1, 1], [], []>} : vector<8x256xbf16>, vector<256x128xbf16>, vector<8x128xf32> -> vector<8x128xf32>
    %c0_9 = arith.constant 0 : index
    %c0_10 = arith.constant 0 : index
    %12 = vector.load %arg5[%c0_9, %c0_10] : memref<1x128xf32, #tpu.memory_space<vmem>>, vector<1x128xf32>
    %13 = vector.broadcast %12 : vector<1x128xf32> to vector<8x128xf32>
    %14 = arith.addf %11, %13 : vector<8x128xf32>
    %cst_11 = arith.constant 0.000000e+00 : f32
    %15 = vector.broadcast %cst_11 : f32 to vector<8x128xf32>
    %16 = arith.maximumf %14, %15 : vector<8x128xf32>
    %17 = arith.truncf %16 : vector<8x128xf32> to vector<8x128xbf16>
    %c0_12 = arith.constant 0 : index
    %c0_13 = arith.constant 0 : index
    %18 = vector.load %arg6[%c0_12, %c0_13] : memref<128x128xbf16, #tpu.memory_space<vmem>>, vector<128x128xbf16>
    %cst_14 = arith.constant dense<0.000000e+00> : vector<8x128xf32>
    %19 = tpu.matmul %17, %18, %cst_14 {dimension_numbers = #tpu.dot_dimension_numbers<[1], [0], [0], [1], [0, 0, 1, 1], [], []>} : vector<8x128xbf16>, vector<128x128xbf16>, vector<8x128xf32> -> vector<8x128xf32>
    %c0_15 = arith.constant 0 : index
    %c0_16 = arith.constant 0 : index
    %20 = vector.load %arg7[%c0_15, %c0_16] : memref<1x128xf32, #tpu.memory_space<vmem>>, vector<1x128xf32>
    %21 = vector.broadcast %20 : vector<1x128xf32> to vector<8x128xf32>
    %22 = arith.addf %19, %21 : vector<8x128xf32>
    %23 = arith.truncf %22 : vector<8x128xf32> to vector<8x128xbf16>
    %c0_17 = arith.constant 0 : index
    %c0_18 = arith.constant 0 : index
    %24 = vector.load %arg8[%c0_17, %c0_18] : memref<128x128xbf16, #tpu.memory_space<vmem>>, vector<128x128xbf16>
    %cst_19 = arith.constant dense<0.000000e+00> : vector<8x128xf32>
    %25 = tpu.matmul %23, %24, %cst_19 {dimension_numbers = #tpu.dot_dimension_numbers<[1], [0], [0], [1], [0, 0, 1, 1], [], []>} : vector<8x128xbf16>, vector<128x128xbf16>, vector<8x128xf32> -> vector<8x128xf32>
    %c0_20 = arith.constant 0 : index
    %c0_21 = arith.constant 0 : index
    %26 = vector.load %arg9[%c0_20, %c0_21] : memref<1x128xf32, #tpu.memory_space<vmem>>, vector<1x128xf32>
    %27 = vector.broadcast %26 : vector<1x128xf32> to vector<8x128xf32>
    %28 = arith.addf %25, %27 : vector<8x128xf32>
    %cst_22 = arith.constant 0.000000e+00 : f32
    %29 = vector.broadcast %cst_22 : f32 to vector<8x128xf32>
    %30 = arith.maximumf %28, %29 : vector<8x128xf32>
    %31 = arith.truncf %30 : vector<8x128xf32> to vector<8x128xbf16>
    %c0_23 = arith.constant 0 : index
    %c0_24 = arith.constant 0 : index
    %32 = vector.load %arg10[%c0_23, %c0_24] : memref<128x256xbf16, #tpu.memory_space<vmem>>, vector<128x256xbf16>
    %cst_25 = arith.constant dense<0.000000e+00> : vector<8x256xf32>
    %33 = tpu.matmul %31, %32, %cst_25 {dimension_numbers = #tpu.dot_dimension_numbers<[1], [0], [0], [1], [0, 0, 1, 1], [], []>} : vector<8x128xbf16>, vector<128x256xbf16>, vector<8x256xf32> -> vector<8x256xf32>
    %c0_26 = arith.constant 0 : index
    %c0_27 = arith.constant 0 : index
    %34 = vector.load %arg11[%c0_26, %c0_27] : memref<1x256xf32, #tpu.memory_space<vmem>>, vector<1x256xf32>
    %35 = vector.broadcast %34 : vector<1x256xf32> to vector<8x256xf32>
    %36 = arith.addf %33, %35 : vector<8x256xf32>
    %cst_28 = arith.constant 0.000000e+00 : f32
    %37 = vector.broadcast %cst_28 : f32 to vector<8x256xf32>
    %38 = arith.maximumf %36, %37 : vector<8x256xf32>
    %39 = arith.truncf %38 : vector<8x256xf32> to vector<8x256xbf16>
    %c0_29 = arith.constant 0 : index
    %c0_30 = arith.constant 0 : index
    %40 = vector.load %arg12[%c0_29, %c0_30] : memref<256x256xbf16, #tpu.memory_space<vmem>>, vector<256x256xbf16>
    %cst_31 = arith.constant dense<0.000000e+00> : vector<8x256xf32>
    %41 = tpu.matmul %39, %40, %cst_31 {dimension_numbers = #tpu.dot_dimension_numbers<[1], [0], [0], [1], [0, 0, 1, 1], [], []>} : vector<8x256xbf16>, vector<256x256xbf16>, vector<8x256xf32> -> vector<8x256xf32>
    %c0_32 = arith.constant 0 : index
    %c0_33 = arith.constant 0 : index
    %42 = vector.load %arg13[%c0_32, %c0_33] : memref<1x256xf32, #tpu.memory_space<vmem>>, vector<1x256xf32>
    %43 = vector.broadcast %42 : vector<1x256xf32> to vector<8x256xf32>
    %44 = arith.addf %41, %43 : vector<8x256xf32>
    %45 = arith.truncf %44 : vector<8x256xf32> to vector<8x256xbf16>
    %c0_34 = arith.constant 0 : index
    %c0_35 = arith.constant 0 : index
    %46 = vector.load %arg14[%c0_34, %c0_35] : memref<8x256xbf16, #tpu.memory_space<vmem>>, vector<8x256xbf16>
    tpu.vector_store %arg14[%c0_34, %c0_35], %45 {strides = array<i32>} : memref<8x256xbf16, #tpu.memory_space<vmem>>, vector<8x256xbf16>,
    return
  }
  func.func @transform_0(%arg0: i32) -> (i32, i32) {
    %c0_i32 = arith.constant 0 : i32
    %c0_i32_0 = arith.constant 0 : i32
    return %arg0, %c0_i32 : i32, i32
  }
  func.func @transform_1(%arg0: i32) -> (i32, i32) {
    %c0_i32 = arith.constant 0 : i32
    %c0_i32_0 = arith.constant 0 : i32
    %c0_i32_1 = arith.constant 0 : i32
    return %c0_i32, %c0_i32_0 : i32, i32
  }
  func.func @transform_2(%arg0: i32) -> (i32, i32) {
    %c0_i32 = arith.constant 0 : i32
    %c0_i32_0 = arith.constant 0 : i32
    %c0_i32_1 = arith.constant 0 : i32
    return %c0_i32, %c0_i32_0 : i32, i32
  }
  func.func @transform_3(%arg0: i32) -> (i32, i32) {
    %c0_i32 = arith.constant 0 : i32
    %c0_i32_0 = arith.constant 0 : i32
    %c0_i32_1 = arith.constant 0 : i32
    return %c0_i32, %c0_i32_0 : i32, i32
  }
  func.func @transform_4(%arg0: i32) -> (i32, i32) {
    %c0_i32 = arith.constant 0 : i32
    %c0_i32_0 = arith.constant 0 : i32
    %c0_i32_1 = arith.constant 0 : i32
    return %c0_i32, %c0_i32_0 : i32, i32
  }
  func.func @transform_5(%arg0: i32) -> (i32, i32) {
    %c0_i32 = arith.constant 0 : i32
    %c0_i32_0 = arith.constant 0 : i32
    %c0_i32_1 = arith.constant 0 : i32
    return %c0_i32, %c0_i32_0 : i32, i32
  }
  func.func @transform_6(%arg0: i32) -> (i32, i32) {
    %c0_i32 = arith.constant 0 : i32
    %c0_i32_0 = arith.constant 0 : i32
    %c0_i32_1 = arith.constant 0 : i32
    return %c0_i32, %c0_i32_0 : i32, i32
  }
  func.func @transform_7(%arg0: i32) -> (i32, i32) {
    %c0_i32 = arith.constant 0 : i32
    %c0_i32_0 = arith.constant 0 : i32
    %c0_i32_1 = arith.constant 0 : i32
    return %c0_i32, %c0_i32_0 : i32, i32
  }
  func.func @transform_8(%arg0: i32) -> (i32, i32) {
    %c0_i32 = arith.constant 0 : i32
    %c0_i32_0 = arith.constant 0 : i32
    %c0_i32_1 = arith.constant 0 : i32
    return %c0_i32, %c0_i32_0 : i32, i32
  }
  func.func @transform_9(%arg0: i32) -> (i32, i32) {
    %c0_i32 = arith.constant 0 : i32
    %c0_i32_0 = arith.constant 0 : i32
    %c0_i32_1 = arith.constant 0 : i32
    return %c0_i32, %c0_i32_0 : i32, i32
  }
  func.func @transform_10(%arg0: i32) -> (i32, i32) {
    %c0_i32 = arith.constant 0 : i32
    %c0_i32_0 = arith.constant 0 : i32
    %c0_i32_1 = arith.constant 0 : i32
    return %c0_i32, %c0_i32_0 : i32, i32
  }
  func.func @transform_11(%arg0: i32) -> (i32, i32) {
    %c0_i32 = arith.constant 0 : i32
    %c0_i32_0 = arith.constant 0 : i32
    %c0_i32_1 = arith.constant 0 : i32
    return %c0_i32, %c0_i32_0 : i32, i32
  }
  func.func @transform_12(%arg0: i32) -> (i32, i32) {
    %c0_i32 = arith.constant 0 : i32
    %c0_i32_0 = arith.constant 0 : i32
    %c0_i32_1 = arith.constant 0 : i32
    return %c0_i32, %c0_i32_0 : i32, i32
  }
  func.func @transform_13(%arg0: i32) -> (i32, i32) {
    %c0_i32 = arith.constant 0 : i32
    %c0_i32_0 = arith.constant 0 : i32
    return %arg0, %c0_i32 : i32, i32
  }
}

</mosaic_0001>

<llo_original>
// kernel: nn_autoencoder_forward.1
$region0: #{nn_autoencoder_forward.1}
  #allocation0 [shape = 'u32[]', space=smem, size = 0x4, offset = 0x4, fixed_abs, tag = 'smem constant byte address 0x4 - core index']
  #allocation1 [shape = 'u32[72,128]{1,0:T(1,128)}', space=vmem, size = 0x9000, scoped, tag = 'internal scratch']
  %s0 = inlined_call_operand.vmem [shape: f32[24,256], index: 0, kind: input, shape index: {}]
  %s1 = inlined_call_operand.vmem [shape: bf16[256,256], index: 1, kind: input, shape index: {}]
  %s2 = inlined_call_operand.vmem [shape: f32[1,256], index: 2, kind: input, shape index: {}]
  %s3 = inlined_call_operand.vmem [shape: bf16[256,128], index: 3, kind: input, shape index: {}]
  %s4 = inlined_call_operand.vmem [shape: f32[1,128], index: 4, kind: input, shape index: {}]
  %s5 = inlined_call_operand.vmem [shape: bf16[128,128], index: 5, kind: input, shape index: {}]
  %s6 = inlined_call_operand.vmem [shape: f32[1,128], index: 6, kind: input, shape index: {}]
  %s7 = inlined_call_operand.vmem [shape: bf16[128,128], index: 7, kind: input, shape index: {}]
  %s8 = inlined_call_operand.vmem [shape: f32[1,128], index: 8, kind: input, shape index: {}]
  %s9 = inlined_call_operand.vmem [shape: bf16[128,256], index: 9, kind: input, shape index: {}]
  %s10 = inlined_call_operand.vmem [shape: f32[1,256], index: 10, kind: input, shape index: {}]
  %s11 = inlined_call_operand.vmem [shape: bf16[256,256], index: 11, kind: input, shape index: {}]
  %s12 = inlined_call_operand.vmem [shape: f32[1,256], index: 12, kind: input, shape index: {}]
  %s13 = inlined_call_operand.vmem [shape: bf16[24,256], index: 13, kind: output, shape index: {}]
  %s14 = sld [smem:[#allocation0]]
  $region85: #{nn_autoencoder_forward.1} parent=0
    _
  %s16 = ssub.s32 1, %s14
  %s17 = scalar_select 0, %s16, %s14
  loop: start=0, step=1, limit=5
  $region2: #{nn_autoencoder_forward.1} parent=0 // loop_pre_header
    _
  $region3: #{nn_autoencoder_forward.1} parent=0 // loop_header
    %s19 = sphi 0, %s23
    %p20 = scmp.ge.s32.totalorder %s19, 5
    %s29 = sphi 0, %s31
    %s32 = sphi 0, %s29
    %s33 = sphi 0, %s32
    %s49 = sphi 0, %s33
    %s53 = sphi 0, %s53
    %s55 = sphi 0, %s53
    %s56 = sphi 0, %s55
    %s70 = sphi 0, %s56
    %s74 = sphi 0, %s74
    %s76 = sphi 0, %s74
    %s77 = sphi 0, %s76
    %s91 = sphi 0, %s77
    %s95 = sphi 0, %s95
    %s97 = sphi 0, %s95
    %s98 = sphi 0, %s97
    %s112 = sphi 0, %s98
    %s116 = sphi 0, %s116
    %s118 = sphi 0, %s116
    %s119 = sphi 0, %s118
    %s133 = sphi 0, %s119
    %s137 = sphi 0, %s137
    %s139 = sphi 0, %s137
    %s140 = sphi 0, %s139
    %s154 = sphi 0, %s140
    %s158 = sphi 0, %s158
    %s160 = sphi 0, %s158
    %s161 = sphi 0, %s160
    %s175 = sphi 0, %s161
    %s179 = sphi 0, %s179
    %s181 = sphi 0, %s179
    %s182 = sphi 0, %s181
    %s196 = sphi 0, %s182
    %s200 = sphi 0, %s200
    %s202 = sphi 0, %s200
    %s203 = sphi 0, %s202
    %s217 = sphi 0, %s203
    %s221 = sphi 0, %s221
    %s223 = sphi 0, %s221
    %s224 = sphi 0, %s223
    %s238 = sphi 0, %s224
    %s242 = sphi 0, %s242
    %s244 = sphi 0, %s242
    %s245 = sphi 0, %s244
    %s259 = sphi 0, %s245
    %s263 = sphi 0, %s263
    %s265 = sphi 0, %s263
    %s266 = sphi 0, %s265
    %s280 = sphi 0, %s266
    %s284 = sphi 0, %s284
    %s286 = sphi 0, %s284
    %s287 = sphi 0, %s286
    %s301 = sphi 0, %s287
    %s307 = sphi 0, %s309
    %s310 = sphi 0, %s307
    %s311 = sphi 0, %s310
    %s327 = sphi 0, %s311
  $region4: #{nn_autoencoder_forward.1} parent=0 // loop_header_branch
    %22 = sbr.rel (%p20) target = $region8
  $region5: #{nn_autoencoder_forward.1} parent=0 // loop_body
    %s24 = ssub.s32 %s19, 1
    %s25 = ssub.s32 %s19, 2
    %s26 = sadd.s32 %s19, 1
    %s27 = ssub.s32 %s19, %s26
    %p28 = scmp.eq.s32.totalorder %s27, 0
    %s30 = sadd.s32 %s29, 1
    %s31 = scalar_select %p28, %s29, %s30
    %p34 = pneg %p28
    %p35 = scmp.eq.s32.totalorder %s19, 2
    %p36 = por %p34, %p35
    %p37 = scmp.ne.s32.totalorder %s29, %s32
    %p38 = scmp.eq.s32.totalorder %s19, 0
    %p39 = por %p37, %p38
    %p40 = scmp.ne.s32.totalorder %s29, %s32
    %p41 = scmp.eq.s32.totalorder %s24, 2
    %p42 = por %p40, %p41
    %p43 = scmp.ne.s32.totalorder %s32, %s33
    %p44 = scmp.eq.s32.totalorder %s24, 0
    %p45 = por %p43, %p44
    %p46 = scmp.ne.s32.totalorder %s32, %s33
    %p47 = scmp.eq.s32.totalorder %s25, 2
    %p48 = por %p46, %p47
    %p50 = scmp.ne.s32.totalorder %s33, %s49
    %p51 = scmp.eq.s32.totalorder %s25, 0
    %p52 = por %p50, %p51
    %s54 = sadd.s32 %s53, 1
    %p57 = scmp.eq.s32.totalorder %s19, 2
    %p58 = scmp.ne.s32.totalorder %s53, %s55
    %p59 = scmp.eq.s32.totalorder %s19, 0
    %p60 = por %p58, %p59
    %p61 = scmp.ne.s32.totalorder %s53, %s55
    %p62 = scmp.eq.s32.totalorder %s24, 2
    %p63 = por %p61, %p62
    %p64 = scmp.ne.s32.totalorder %s55, %s56
    %p65 = scmp.eq.s32.totalorder %s24, 0
    %p66 = por %p64, %p65
    %p67 = scmp.ne.s32.totalorder %s55, %s56
    %p68 = scmp.eq.s32.totalorder %s25, 2
    %p69 = por %p67, %p68
    %p71 = scmp.ne.s32.totalorder %s56, %s70
    %p72 = scmp.eq.s32.totalorder %s25, 0
    %p73 = por %p71, %p72
    %s75 = sadd.s32 %s74, 1
    %p78 = scmp.eq.s32.totalorder %s19, 2
    %p79 = scmp.ne.s32.totalorder %s74, %s76
    %p80 = scmp.eq.s32.totalorder %s19, 0
    %p81 = por %p79, %p80
    %p82 = scmp.ne.s32.totalorder %s74, %s76
    %p83 = scmp.eq.s32.totalorder %s24, 2
    %p84 = por %p82, %p83
    %p85 = scmp.ne.s32.totalorder %s76, %s77
    %p86 = scmp.eq.s32.totalorder %s24, 0
    %p87 = por %p85, %p86
    %p88 = scmp.ne.s32.totalorder %s76, %s77
    %p89 = scmp.eq.s32.totalorder %s25, 2
    %p90 = por %p88, %p89
    %p92 = scmp.ne.s32.totalorder %s77, %s91
    %p93 = scmp.eq.s32.totalorder %s25, 0
    %p94 = por %p92, %p93
    %s96 = sadd.s32 %s95, 1
    %p99 = scmp.eq.s32.totalorder %s19, 2
    %p100 = scmp.ne.s32.totalorder %s95, %s97
    %p101 = scmp.eq.s32.totalorder %s19, 0
    %p102 = por %p100, %p101
    %p103 = scmp.ne.s32.totalorder %s95, %s97
    %p104 = scmp.eq.s32.totalorder %s24, 2
    %p105 = por %p103, %p104
    %p106 = scmp.ne.s32.totalorder %s97, %s98
    %p107 = scmp.eq.s32.totalorder %s24, 0
    %p108 = por %p106, %p107
    %p109 = scmp.ne.s32.totalorder %s97, %s98
    %p110 = scmp.eq.s32.totalorder %s25, 2
    %p111 = por %p109, %p110
    %p113 = scmp.ne.s32.totalorder %s98, %s112
    %p114 = scmp.eq.s32.totalorder %s25, 0
    %p115 = por %p113, %p114
    %s117 = sadd.s32 %s116, 1
    %p120 = scmp.eq.s32.totalorder %s19, 2
    %p121 = scmp.ne.s32.totalorder %s116, %s118
    %p122 = scmp.eq.s32.totalorder %s19, 0
    %p123 = por %p121, %p122
    %p124 = scmp.ne.s32.totalorder %s116, %s118
    %p125 = scmp.eq.s32.totalorder %s24, 2
    %p126 = por %p124, %p125
    %p127 = scmp.ne.s32.totalorder %s118, %s119
    %p128 = scmp.eq.s32.totalorder %s24, 0
    %p129 = por %p127, %p128
    %p130 = scmp.ne.s32.totalorder %s118, %s119
    %p131 = scmp.eq.s32.totalorder %s25, 2
    %p132 = por %p130, %p131
    %p134 = scmp.ne.s32.totalorder %s119, %s133
    %p135 = scmp.eq.s32.totalorder %s25, 0
    %p136 = por %p134, %p135
    %s138 = sadd.s32 %s137, 1
    %p141 = scmp.eq.s32.totalorder %s19, 2
    %p142 = scmp.ne.s32.totalorder %s137, %s139
    %p143 = scmp.eq.s32.totalorder %s19, 0
    %p144 = por %p142, %p143
    %p145 = scmp.ne.s32.totalorder %s137, %s139
    %p146 = scmp.eq.s32.totalorder %s24, 2
    %p147 = por %p145, %p146
    %p148 = scmp.ne.s32.totalorder %s139, %s140
    %p149 = scmp.eq.s32.totalorder %s24, 0
    %p150 = por %p148, %p149
    %p151 = scmp.ne.s32.totalorder %s139, %s140
    %p152 = scmp.eq.s32.totalorder %s25, 2
    %p153 = por %p151, %p152
    %p155 = scmp.ne.s32.totalorder %s140, %s154
    %p156 = scmp.eq.s32.totalorder %s25, 0
    %p157 = por %p155, %p156
    %s159 = sadd.s32 %s158, 1
    %p162 = scmp.eq.s32.totalorder %s19, 2
    %p163 = scmp.ne.s32.totalorder %s158, %s160
    %p164 = scmp.eq.s32.totalorder %s19, 0
    %p165 = por %p163, %p164
    %p166 = scmp.ne.s32.totalorder %s158, %s160
    %p167 = scmp.eq.s32.totalorder %s24, 2
    %p168 = por %p166, %p167
    %p169 = scmp.ne.s32.totalorder %s160, %s161
    %p170 = scmp.eq.s32.totalorder %s24, 0
    %p171 = por %p169, %p170
    %p172 = scmp.ne.s32.totalorder %s160, %s161
    %p173 = scmp.eq.s32.totalorder %s25, 2
    %p174 = por %p172, %p173
    %p176 = scmp.ne.s32.totalorder %s161, %s175
    %p177 = scmp.eq.s32.totalorder %s25, 0
    %p178 = por %p176, %p177
    %s180 = sadd.s32 %s179, 1
    %p183 = scmp.eq.s32.totalorder %s19, 2
    %p184 = scmp.ne.s32.totalorder %s179, %s181
    %p185 = scmp.eq.s32.totalorder %s19, 0
    %p186 = por %p184, %p185
    %p187 = scmp.ne.s32.totalorder %s179, %s181
    %p188 = scmp.eq.s32.totalorder %s24, 2
    %p189 = por %p187, %p188
    %p190 = scmp.ne.s32.totalorder %s181, %s182
    %p191 = scmp.eq.s32.totalorder %s24, 0
    %p192 = por %p190, %p191
    %p193 = scmp.ne.s32.totalorder %s181, %s182
    %p194 = scmp.eq.s32.totalorder %s25, 2
    %p195 = por %p193, %p194
    %p197 = scmp.ne.s32.totalorder %s182, %s196
    %p198 = scmp.eq.s32.totalorder %s25, 0
    %p199 = por %p197, %p198
    %s201 = sadd.s32 %s200, 1
    %p204 = scmp.eq.s32.totalorder %s19, 2
    %p205 = scmp.ne.s32.totalorder %s200, %s202
    %p206 = scmp.eq.s32.totalorder %s19, 0
    %p207 = por %p205, %p206
    %p208 = scmp.ne.s32.totalorder %s200, %s202
    %p209 = scmp.eq.s32.totalorder %s24, 2
    %p210 = por %p208, %p209
    %p211 = scmp.ne.s32.totalorder %s202, %s203
    %p212 = scmp.eq.s32.totalorder %s24, 0
    %p213 = por %p211, %p212
    %p214 = scmp.ne.s32.totalorder %s202, %s203
    %p215 = scmp.eq.s32.totalorder %s25, 2
    %p216 = por %p214, %p215
    %p218 = scmp.ne.s32.totalorder %s203, %s217
    %p219 = scmp.eq.s32.totalorder %s25, 0
    %p220 = por %p218, %p219
    %s222 = sadd.s32 %s221, 1
    %p225 = scmp.eq.s32.totalorder %s19, 2
    %p226 = scmp.ne.s32.totalorder %s221, %s223
    %p227 = scmp.eq.s32.totalorder %s19, 0
    %p228 = por %p226, %p227
    %p229 = scmp.ne.s32.totalorder %s221, %s223
    %p230 = scmp.eq.s32.totalorder %s24, 2
    %p231 = por %p229, %p230
    %p232 = scmp.ne.s32.totalorder %s223, %s224
    %p233 = scmp.eq.s32.totalorder %s24, 0
    %p234 = por %p232, %p233
    %p235 = scmp.ne.s32.totalorder %s223, %s224
    %p236 = scmp.eq.s32.totalorder %s25, 2
    %p237 = por %p235, %p236
    %p239 = scmp.ne.s32.totalorder %s224, %s238
    %p240 = scmp.eq.s32.totalorder %s25, 0
    %p241 = por %p239, %p240
    %s243 = sadd.s32 %s242, 1
    %p246 = scmp.eq.s32.totalorder %s19, 2
    %p247 = scmp.ne.s32.totalorder %s242, %s244
    %p248 = scmp.eq.s32.totalorder %s19, 0
    %p249 = por %p247, %p248
    %p250 = scmp.ne.s32.totalorder %s242, %s244
    %p251 = scmp.eq.s32.totalorder %s24, 2
    %p252 = por %p250, %p251
    %p253 = scmp.ne.s32.totalorder %s244, %s245
    %p254 = scmp.eq.s32.totalorder %s24, 0
    %p255 = por %p253, %p254
    %p256 = scmp.ne.s32.totalorder %s244, %s245
    %p257 = scmp.eq.s32.totalorder %s25, 2
    %p258 = por %p256, %p257
    %p260 = scmp.ne.s32.totalorder %s245, %s259
    %p261 = scmp.eq.s32.totalorder %s25, 0
    %p262 = por %p260, %p261
    %s264 = sadd.s32 %s263, 1
    %p267 = scmp.eq.s32.totalorder %s19, 2
    %p268 = scmp.ne.s32.totalorder %s263, %s265
    %p269 = scmp.eq.s32.totalorder %s19, 0
    %p270 = por %p268, %p269
    %p271 = scmp.ne.s32.totalorder %s263, %s265
    %p272 = scmp.eq.s32.totalorder %s24, 2
    %p273 = por %p271, %p272
    %p274 = scmp.ne.s32.totalorder %s265, %s266
    %p275 = scmp.eq.s32.totalorder %s24, 0
    %p276 = por %p274, %p275
    %p277 = scmp.ne.s32.totalorder %s265, %s266
    %p278 = scmp.eq.s32.totalorder %s25, 2
    %p279 = por %p277, %p278
    %p281 = scmp.ne.s32.totalorder %s266, %s280
    %p282 = scmp.eq.s32.totalorder %s25, 0
    %p283 = por %p281, %p282
    %s285 = sadd.s32 %s284, 1
    %p288 = scmp.eq.s32.totalorder %s19, 2
    %p289 = scmp.ne.s32.totalorder %s284, %s286
    %p290 = scmp.eq.s32.totalorder %s19, 0
    %p291 = por %p289, %p290
    %p292 = scmp.ne.s32.totalorder %s284, %s286
    %p293 = scmp.eq.s32.totalorder %s24, 2
    %p294 = por %p292, %p293
    %p295 = scmp.ne.s32.totalorder %s286, %s287
    %p296 = scmp.eq.s32.totalorder %s24, 0
    %p297 = por %p295, %p296
    %p298 = scmp.ne.s32.totalorder %s286, %s287
    %p299 = scmp.eq.s32.totalorder %s25, 2
    %p300 = por %p298, %p299
    %p302 = scmp.ne.s32.totalorder %s287, %s301
    %p303 = scmp.eq.s32.totalorder %s25, 0
    %p304 = por %p302, %p303
    %s305 = ssub.s32 %s19, %s26
    %p306 = scmp.eq.s32.totalorder %s305, 0
    %s308 = sadd.s32 %s307, 1
    %s309 = scalar_select %p306, %s307, %s308
    %p312 = pneg %p306
    %p313 = scmp.eq.s32.totalorder %s19, 2
    %p314 = por %p312, %p313
    %p315 = scmp.ne.s32.totalorder %s307, %s310
    %p316 = scmp.eq.s32.totalorder %s19, 0
    %p317 = por %p315, %p316
    %p318 = scmp.ne.s32.totalorder %s307, %s310
    %p319 = scmp.eq.s32.totalorder %s24, 2
    %p320 = por %p318, %p319
    %p321 = scmp.ne.s32.totalorder %s310, %s311
    %p322 = scmp.eq.s32.totalorder %s24, 0
    %p323 = por %p321, %p322
    %p324 = scmp.ne.s32.totalorder %s310, %s311
    %p325 = scmp.eq.s32.totalorder %s25, 2
    %p326 = por %p324, %p325
    %p328 = scmp.ne.s32.totalorder %s311, %s327
    %p329 = scmp.eq.s32.totalorder %s25, 0
    %p330 = por %p328, %p329
    %p331 = scmp.le.s32.totalorder 1, %s19
    %p332 = scmp.lt.s32.totalorder %s19, 4
    %p333 = pnand %p331, %p332
    %p334 = pneg %p333
    // Predicated region
    $region9: #{nn_autoencoder_forward.1} parent=5 // pred_check
      _
    $region10: #{nn_autoencoder_forward.1} parent=5 // pred_check_branch
      %336 = sbr.rel (%p333) target = $region12
    $region11: #{nn_autoencoder_forward.1} parent=5 // pred_region
      %s337 = ssub.s32 %s19, 1
      // Predicated region
      $region13: #{nn_autoencoder_forward.1} parent=11 // pred_check
        %p338 = pneg %p66
      $region14: #{nn_autoencoder_forward.1} parent=11 // pred_check_branch
        %340 = sbr.rel (%p338) target = $region16
      $region15: #{nn_autoencoder_forward.1} parent=11 // pred_region
        _
      $region16: #{nn_autoencoder_forward.1} parent=11 // pred_fallthru
        _
      // Predicated region
      $region17: #{nn_autoencoder_forward.1} parent=11 // pred_check
        %p341 = pneg %p87
      $region18: #{nn_autoencoder_forward.1} parent=11 // pred_check_branch
        %343 = sbr.rel (%p341) target = $region20
      $region19: #{nn_autoencoder_forward.1} parent=11 // pred_region
        _
      $region20: #{nn_autoencoder_forward.1} parent=11 // pred_fallthru
        _
      // Predicated region
      $region21: #{nn_autoencoder_forward.1} parent=11 // pred_check
        %p344 = pneg %p108
      $region22: #{nn_autoencoder_forward.1} parent=11 // pred_check_branch
        %346 = sbr.rel (%p344) target = $region24
      $region23: #{nn_autoencoder_forward.1} parent=11 // pred_region
        _
      $region24: #{nn_autoencoder_forward.1} parent=11 // pred_fallthru
        _
      // Predicated region
      $region25: #{nn_autoencoder_forward.1} parent=11 // pred_check
        %p347 = pneg %p129
      $region26: #{nn_autoencoder_forward.1} parent=11 // pred_check_branch
        %349 = sbr.rel (%p347) target = $region28
      $region27: #{nn_autoencoder_forward.1} parent=11 // pred_region
        _
      $region28: #{nn_autoencoder_forward.1} parent=11 // pred_fallthru
        _
      // Predicated region
      $region29: #{nn_autoencoder_forward.1} parent=11 // pred_check
        %p350 = pneg %p150
      $region30: #{nn_autoencoder_forward.1} parent=11 // pred_check_branch
        %352 = sbr.rel (%p350) target = $region32
      $region31: #{nn_autoencoder_forward.1} parent=11 // pred_region
        _
      $region32: #{nn_autoencoder_forward.1} parent=11 // pred_fallthru
        _
      // Predicated region
      $region33: #{nn_autoencoder_forward.1} parent=11 // pred_check
        %p353 = pneg %p171
      $region34: #{nn_autoencoder_forward.1} parent=11 // pred_check_branch
        %355 = sbr.rel (%p353) target = $region36
      $region35: #{nn_autoencoder_forward.1} parent=11 // pred_region
        _
      $region36: #{nn_autoencoder_forward.1} parent=11 // pred_fallthru
        _
      // Predicated region
      $region37: #{nn_autoencoder_forward.1} parent=11 // pred_check
        %p356 = pneg %p192
      $region38: #{nn_autoencoder_forward.1} parent=11 // pred_check_branch
        %358 = sbr.rel (%p356) target = $region40
      $region39: #{nn_autoencoder_forward.1} parent=11 // pred_region
        _
      $region40: #{nn_autoencoder_forward.1} parent=11 // pred_fallthru
        _
      // Predicated region
      $region41: #{nn_autoencoder_forward.1} parent=11 // pred_check
        %p359 = pneg %p213
      $region42: #{nn_autoencoder_forward.1} parent=11 // pred_check_branch
        %361 = sbr.rel (%p359) target = $region44
      $region43: #{nn_autoencoder_forward.1} parent=11 // pred_region
        _
      $region44: #{nn_autoencoder_forward.1} parent=11 // pred_fallthru
        _
      // Predicated region
      $region45: #{nn_autoencoder_forward.1} parent=11 // pred_check
        %p362 = pneg %p234
      $region46: #{nn_autoencoder_forward.1} parent=11 // pred_check_branch
        %364 = sbr.rel (%p362) target = $region48
      $region47: #{nn_autoencoder_forward.1} parent=11 // pred_region
        _
      $region48: #{nn_autoencoder_forward.1} parent=11 // pred_fallthru
        _
      // Predicated region
      $region49: #{nn_autoencoder_forward.1} parent=11 // pred_check
        %p365 = pneg %p255
      $region50: #{nn_autoencoder_forward.1} parent=11 // pred_check_branch
        %367 = sbr.rel (%p365) target = $region52
      $region51: #{nn_autoencoder_forward.1} parent=11 // pred_region
        _
      $region52: #{nn_autoencoder_forward.1} parent=11 // pred_fallthru
        _
      // Predicated region
      $region53: #{nn_autoencoder_forward.1} parent=11 // pred_check
        %p368 = pneg %p276
      $region54: #{nn_autoencoder_forward.1} parent=11 // pred_check_branch
        %370 = sbr.rel (%p368) target = $region56
      $region55: #{nn_autoencoder_forward.1} parent=11 // pred_region
        _
      $region56: #{nn_autoencoder_forward.1} parent=11 // pred_fallthru
        _
      // Predicated region
      $region57: #{nn_autoencoder_forward.1} parent=11 // pred_check
        %p371 = pneg %p297
      $region58: #{nn_autoencoder_forward.1} parent=11 // pred_check_branch
        %373 = sbr.rel (%p371) target = $region60
      $region59: #{nn_autoencoder_forward.1} parent=11 // pred_region
        _
      $region60: #{nn_autoencoder_forward.1} parent=11 // pred_fallthru
        _
    $region12: #{nn_autoencoder_forward.1} parent=5 // pred_fallthru
      _
    %p374 = scmp.lt.s32.totalorder %s19, 3
    // Predicated region
    $region61: #{nn_autoencoder_forward.1} parent=5 // pred_check
      %p375 = pneg %p374
    $region62: #{nn_autoencoder_forward.1} parent=5 // pred_check_branch
      %377 = sbr.rel (%p375) target = $region64
    $region63: #{nn_autoencoder_forward.1} parent=5 // pred_region
      // Predicated region
      $region65: #{nn_autoencoder_forward.1} parent=63 // pred_check
        %p378 = pneg %p39
      $region66: #{nn_autoencoder_forward.1} parent=63 // pred_check_branch
        %380 = sbr.rel (%p378) target = $region68
      $region67: #{nn_autoencoder_forward.1} parent=63 // pred_region
        %p381 = scmp.lt.s32.totalorder %s19, 2
        %s382 = scalar_select %p381, %s19, 2
        %s383 = smul.addr %s382, 2
        %s384 = smul.addr %s383, 8
        %s385 = scalar_lea.vmem %s0, %s384
      $region68: #{nn_autoencoder_forward.1} parent=63 // pred_fallthru
        _
    $region64: #{nn_autoencoder_forward.1} parent=5 // pred_fallthru
      _
    %p386 = scmp.le.s32.totalorder 1, %s19
    %p387 = scmp.lt.s32.totalorder %s19, 4
    %p388 = pnand %p386, %p387
    %p389 = pneg %p388
    // Predicated region
    $region69: #{nn_autoencoder_forward.1} parent=5 // pred_check
      _
    $region70: #{nn_autoencoder_forward.1} parent=5 // pred_check_branch
      %391 = sbr.rel (%p388) target = $region72
    $region71: #{nn_autoencoder_forward.1} parent=5 // pred_region
      %s392 = ssub.s32 %s19, 1
      %p393 = scmp.lt.s32.totalorder %s24, 2
      %s394 = scalar_select %p393, %s24, 2
      %s395 = smul.addr %s394, 2
      %s396 = smul.addr %s395, 8
      %s397 = scalar_lea.vmem %s0, %s396
      %p398 = pneg %p45
      %p399 = pneg %p42
      %p400 = pneg %p66
      %p401 = pneg %p63
      %p402 = pneg %p87
      %p403 = pneg %p84
      %p404 = pneg %p108
      %p405 = pneg %p105
      %p406 = pneg %p129
      %p407 = pneg %p126
      %p408 = pneg %p150
      %p409 = pneg %p147
      %p410 = pneg %p171
      %p411 = pneg %p168
      %p412 = pneg %p192
      %p413 = pneg %p189
      %p414 = pneg %p213
      %p415 = pneg %p210
      %p416 = pneg %p234
      %p417 = pneg %p231
      %p418 = pneg %p255
      %p419 = pneg %p252
      %p420 = pneg %p276
      %p421 = pneg %p273
      %p422 = pneg %p297
      %p423 = pneg %p294
      %p424 = pneg %p323
      %p425 = pneg %p320
      %p426 = scmp.lt.s32.totalorder %s24, 2
      %s427 = scalar_select %p426, %s24, 2
      %s428 = smul.addr %s427, 2
      %s429 = smul.addr %s428, 4
      %s430 = scalar_lea.vmem %s13, %s429
      %p431 = scmp.lt.s32.totalorder %s24, 2
      %s432 = scalar_select %p431, %s24, 2
      %s433 = smul.addr %s432, 2
      %s434 = smul.addr %s433, 8
      %s435 = scalar_lea.vmem %s0, %s434
      %p436 = scmp.lt.s32.totalorder %s24, 2
      %s437 = scalar_select %p436, %s24, 2
      %s438 = smul.addr %s437, 2
      %s439 = smul.addr %s438, 4
      %s440 = scalar_lea.vmem %s13, %s439
      %v441 = vld [vmem:[%s435] sm:$0xff]
      %v442 = vld [vmem:[%s435 + $0x8] sm:$0xff]
      %v443 = vpack.c.bf16 %v441, %v441
      %v444 = vpack.c.bf16 %v442, %v442
      %v445 = vld [vmem:[%s1] sm:$0xff]
      %v446 = vld [vmem:[%s1 + $0x8] sm:$0xff]
      %v447 = vld [vmem:[%s1 + $0x10] sm:$0xff]
      %v448 = vld [vmem:[%s1 + $0x18] sm:$0xff]
      %v449 = vld [vmem:[%s1 + $0x20] sm:$0xff]
      %v450 = vld [vmem:[%s1 + $0x28] sm:$0xff]
      %v451 = vld [vmem:[%s1 + $0x30] sm:$0xff]
      %v452 = vld [vmem:[%s1 + $0x38] sm:$0xff]
      %v453 = vld [vmem:[%s1 + $0x40] sm:$0xff]
      %v454 = vld [vmem:[%s1 + $0x48] sm:$0xff]
      %v455 = vld [vmem:[%s1 + $0x50] sm:$0xff]
      %v456 = vld [vmem:[%s1 + $0x58] sm:$0xff]
      %v457 = vld [vmem:[%s1 + $0x60] sm:$0xff]
      %v458 = vld [vmem:[%s1 + $0x68] sm:$0xff]
      %v459 = vld [vmem:[%s1 + $0x70] sm:$0xff]
      %v460 = vld [vmem:[%s1 + $0x78] sm:$0xff]
      %v461 = vld [vmem:[%s1 + $0x80] sm:$0xff]
      %v462 = vld [vmem:[%s1 + $0x88] sm:$0xff]
      %v463 = vld [vmem:[%s1 + $0x90] sm:$0xff]
      %v464 = vld [vmem:[%s1 + $0x98] sm:$0xff]
      %v465 = vld [vmem:[%s1 + $0xa0] sm:$0xff]
      %v466 = vld [vmem:[%s1 + $0xa8] sm:$0xff]
      %v467 = vld [vmem:[%s1 + $0xb0] sm:$0xff]
      %v468 = vld [vmem:[%s1 + $0xb8] sm:$0xff]
      %v469 = vld [vmem:[%s1 + $0xc0] sm:$0xff]
      %v470 = vld [vmem:[%s1 + $0xc8] sm:$0xff]
      %v471 = vld [vmem:[%s1 + $0xd0] sm:$0xff]
      %v472 = vld [vmem:[%s1 + $0xd8] sm:$0xff]
      %v473 = vld [vmem:[%s1 + $0xe0] sm:$0xff]
      %v474 = vld [vmem:[%s1 + $0xe8] sm:$0xff]
      %v475 = vld [vmem:[%s1 + $0xf0] sm:$0xff]
      %v476 = vld [vmem:[%s1 + $0xf8] sm:$0xff]
      %v477 = vld [vmem:[%s2] sm:$0x3]
      %v479 = vperm.slane %v477, 0
      %v480 = vperm.slane %v477, 1
      %v515 = vunpack.c.l.b16 %v445
      %v516 = vunpack.c.h.b16 %v445
      %v517 = vunpack.c.l.b16 %v446
      %v518 = vunpack.c.h.b16 %v446
      %v519 = vunpack.c.l.b16 %v447
      %v520 = vunpack.c.h.b16 %v447
      %v521 = vunpack.c.l.b16 %v448
      %v522 = vunpack.c.h.b16 %v448
      %v523 = vunpack.c.l.b16 %v449
      %v524 = vunpack.c.h.b16 %v449
      %v525 = vunpack.c.l.b16 %v450
      %v526 = vunpack.c.h.b16 %v450
      %v527 = vunpack.c.l.b16 %v451
      %v528 = vunpack.c.h.b16 %v451
      %v529 = vunpack.c.l.b16 %v452
      %v530 = vunpack.c.h.b16 %v452
      %v531 = vunpack.c.l.b16 %v453
      %v532 = vunpack.c.h.b16 %v453
      %v533 = vunpack.c.l.b16 %v454
      %v534 = vunpack.c.h.b16 %v454
      %v535 = vunpack.c.l.b16 %v455
      %v536 = vunpack.c.h.b16 %v455
      %v537 = vunpack.c.l.b16 %v456
      %v538 = vunpack.c.h.b16 %v456
      %v539 = vunpack.c.l.b16 %v457
      %v540 = vunpack.c.h.b16 %v457
      %v541 = vunpack.c.l.b16 %v458
      %v542 = vunpack.c.h.b16 %v458
      %v543 = vunpack.c.l.b16 %v459
      %v544 = vunpack.c.h.b16 %v459
      %v545 = vunpack.c.l.b16 %v460
      %v546 = vunpack.c.h.b16 %v460
      %v547 = vunpack.c.l.b16 %v461
      %v548 = vunpack.c.h.b16 %v461
      %v549 = vunpack.c.l.b16 %v462
      %v550 = vunpack.c.h.b16 %v462
      %v551 = vunpack.c.l.b16 %v463
      %v552 = vunpack.c.h.b16 %v463
      %v553 = vunpack.c.l.b16 %v464
      %v554 = vunpack.c.h.b16 %v464
      %v555 = vunpack.c.l.b16 %v465
      %v556 = vunpack.c.h.b16 %v465
      %v557 = vunpack.c.l.b16 %v466
      %v558 = vunpack.c.h.b16 %v466
      %v559 = vunpack.c.l.b16 %v467
      %v560 = vunpack.c.h.b16 %v467
      %v561 = vunpack.c.l.b16 %v468
      %v562 = vunpack.c.h.b16 %v468
      %v563 = vunpack.c.l.b16 %v469
      %v564 = vunpack.c.h.b16 %v469
      %v565 = vunpack.c.l.b16 %v470
      %v566 = vunpack.c.h.b16 %v470
      %v567 = vunpack.c.l.b16 %v471
      %v568 = vunpack.c.h.b16 %v471
      %v569 = vunpack.c.l.b16 %v472
      %v570 = vunpack.c.h.b16 %v472
      %v571 = vunpack.c.l.b16 %v473
      %v572 = vunpack.c.h.b16 %v473
      %v573 = vunpack.c.l.b16 %v474
      %v574 = vunpack.c.h.b16 %v474
      %v575 = vunpack.c.l.b16 %v475
      %v576 = vunpack.c.h.b16 %v475
      %v577 = vunpack.c.l.b16 %v476
      %v578 = vunpack.c.h.b16 %v476
      %v579 = vpack.c.b16 %v517, %v515
      %v580 = vpack.c.b16 %v518, %v516
      %v581 = vpack.c.b16 %v521, %v519
      %v582 = vpack.c.b16 %v522, %v520
      %v583 = vpack.c.b16 %v525, %v523
      %v584 = vpack.c.b16 %v526, %v524
      %v585 = vpack.c.b16 %v529, %v527
      %v586 = vpack.c.b16 %v530, %v528
      %v587 = vpack.c.b16 %v533, %v531
      %v588 = vpack.c.b16 %v534, %v532
      %v589 = vpack.c.b16 %v537, %v535
      %v590 = vpack.c.b16 %v538, %v536
      %v591 = vpack.c.b16 %v541, %v539
      %v592 = vpack.c.b16 %v542, %v540
      %v593 = vpack.c.b16 %v545, %v543
      %v594 = vpack.c.b16 %v546, %v544
      %v595 = vpack.c.b16 %v549, %v547
      %v596 = vpack.c.b16 %v550, %v548
      %v597 = vpack.c.b16 %v553, %v551
      %v598 = vpack.c.b16 %v554, %v552
      %v599 = vpack.c.b16 %v557, %v555
      %v600 = vpack.c.b16 %v558, %v556
      %v601 = vpack.c.b16 %v561, %v559
      %v602 = vpack.c.b16 %v562, %v560
      %v603 = vpack.c.b16 %v565, %v563
      %v604 = vpack.c.b16 %v566, %v564
      %v605 = vpack.c.b16 %v569, %v567
      %v606 = vpack.c.b16 %v570, %v568
      %v607 = vpack.c.b16 %v573, %v571
      %v608 = vpack.c.b16 %v574, %v572
      %v609 = vpack.c.b16 %v577, %v575
      %v610 = vpack.c.b16 %v578, %v576
      %643 = vmatpush.bf16.msra.mxu0 %v593
      %644 = vmatpush.bf16.msra.mxu0 %v591
      %645 = vmatpush.bf16.msra.mxu0 %v589
      %646 = vmatpush.bf16.msra.mxu0 %v587
      %647 = vmatpush.bf16.msra.mxu0 %v585
      %648 = vmatpush.bf16.msra.mxu0 %v583
      %649 = vmatpush.bf16.msra.mxu0 %v581
      %650 = vmatpush.bf16.msra.mxu0 %v579
      %651 = vmatmul.bf16.gmra.mxu0 %v443
      %v652 = vpop.f32.mrf.mxu0
      %v653 = vadd.f32 %v479, %v652
      %v654 = vpop.f32.mrf.mxu0
      %655 = vdwg.mxu0
      %656 = vmatpush.bf16.msra.mxu0 %v609
      %657 = vmatpush.bf16.msra.mxu0 %v607
      %658 = vmatpush.bf16.msra.mxu0 %v605
      %659 = vmatpush.bf16.msra.mxu0 %v603
      %660 = vmatpush.bf16.msra.mxu0 %v601
      %661 = vmatpush.bf16.msra.mxu0 %v599
      %662 = vmatpush.bf16.msra.mxu0 %v597
      %663 = vmatpush.bf16.msra.mxu0 %v595
      %664 = vmatmul.bf16.gmra.mxu0 %v444
      %v665 = vpop.f32.mrf.mxu0
      %v666 = vadd.f32 %v653, %v665
      %v667 = vpop.f32.mrf.mxu0
      %668 = vdwg.mxu0
      %669 = vmatpush.bf16.msra.mxu0 %v594
      %670 = vmatpush.bf16.msra.mxu0 %v592
      %671 = vmatpush.bf16.msra.mxu0 %v590
      %672 = vmatpush.bf16.msra.mxu0 %v588
      %673 = vmatpush.bf16.msra.mxu0 %v586
      %674 = vmatpush.bf16.msra.mxu0 %v584
      %675 = vmatpush.bf16.msra.mxu0 %v582
      %676 = vmatpush.bf16.msra.mxu0 %v580
      %677 = vmatmul.bf16.gmra.mxu0 %v443
      %v678 = vpop.f32.mrf.mxu0
      %v679 = vadd.f32 %v480, %v678
      %v680 = vpop.f32.mrf.mxu0
      %681 = vdwg.mxu0
      %682 = vmatpush.bf16.msra.mxu0 %v610
      %683 = vmatpush.bf16.msra.mxu0 %v608
      %684 = vmatpush.bf16.msra.mxu0 %v606
      %685 = vmatpush.bf16.msra.mxu0 %v604
      %686 = vmatpush.bf16.msra.mxu0 %v602
      %687 = vmatpush.bf16.msra.mxu0 %v600
      %688 = vmatpush.bf16.msra.mxu0 %v598
      %689 = vmatpush.bf16.msra.mxu0 %v596
      %690 = vmatmul.bf16.gmra.mxu0 %v444
      %v691 = vpop.f32.mrf.mxu0
      %v692 = vadd.f32 %v679, %v691
      %v693 = vpop.f32.mrf.mxu0
      %694 = vdwg.mxu0
      %v695 = vmax.f32 %v666, 0.0
      %v696 = vmax.f32 %v692, 0.0
      %v697 = vpack.c.bf16 %v695, %v695
      %v698 = vpack.c.bf16 %v696, %v696
      %v699 = vld [vmem:[%s3] sm:$0xf]
      %v700 = vld [vmem:[%s3 + $0x4] sm:$0xf]
      %v701 = vld [vmem:[%s3 + $0x8] sm:$0xf]
      %v702 = vld [vmem:[%s3 + $0xc] sm:$0xf]
      %v703 = vld [vmem:[%s3 + $0x10] sm:$0xf]
      %v704 = vld [vmem:[%s3 + $0x14] sm:$0xf]
      %v705 = vld [vmem:[%s3 + $0x18] sm:$0xf]
      %v706 = vld [vmem:[%s3 + $0x1c] sm:$0xf]
      %v707 = vld [vmem:[%s3 + $0x20] sm:$0xf]
      %v708 = vld [vmem:[%s3 + $0x24] sm:$0xf]
      %v709 = vld [vmem:[%s3 + $0x28] sm:$0xf]
      %v710 = vld [vmem:[%s3 + $0x2c] sm:$0xf]
      %v711 = vld [vmem:[%s3 + $0x30] sm:$0xf]
      %v712 = vld [vmem:[%s3 + $0x34] sm:$0xf]
      %v713 = vld [vmem:[%s3 + $0x38] sm:$0xf]
      %v714 = vld [vmem:[%s3 + $0x3c] sm:$0xf]
      %v715 = vld [vmem:[%s3 + $0x40] sm:$0xf]
      %v716 = vld [vmem:[%s3 + $0x44] sm:$0xf]
      %v717 = vld [vmem:[%s3 + $0x48] sm:$0xf]
      %v718 = vld [vmem:[%s3 + $0x4c] sm:$0xf]
      %v719 = vld [vmem:[%s3 + $0x50] sm:$0xf]
      %v720 = vld [vmem:[%s3 + $0x54] sm:$0xf]
      %v721 = vld [vmem:[%s3 + $0x58] sm:$0xf]
      %v722 = vld [vmem:[%s3 + $0x5c] sm:$0xf]
      %v723 = vld [vmem:[%s3 + $0x60] sm:$0xf]
      %v724 = vld [vmem:[%s3 + $0x64] sm:$0xf]
      %v725 = vld [vmem:[%s3 + $0x68] sm:$0xf]
      %v726 = vld [vmem:[%s3 + $0x6c] sm:$0xf]
      %v727 = vld [vmem:[%s3 + $0x70] sm:$0xf]
      %v728 = vld [vmem:[%s3 + $0x74] sm:$0xf]
      %v729 = vld [vmem:[%s3 + $0x78] sm:$0xf]
      %v730 = vld [vmem:[%s3 + $0x7c] sm:$0xf]
      %v731 = vld [vmem:[%s4] sm:$0x1]
      %v733 = vperm.slane %v731, 0
      %v767 = vunpack.c.l.b16 %v699
      %v768 = vunpack.c.l.b16 %v700
      %v769 = vunpack.c.l.b16 %v701
      %v770 = vunpack.c.l.b16 %v702
      %v771 = vunpack.c.l.b16 %v703
      %v772 = vunpack.c.l.b16 %v704
      %v773 = vunpack.c.l.b16 %v705
      %v774 = vunpack.c.l.b16 %v706
      %v775 = vunpack.c.l.b16 %v707
      %v776 = vunpack.c.l.b16 %v708
      %v777 = vunpack.c.l.b16 %v709
      %v778 = vunpack.c.l.b16 %v710
      %v779 = vunpack.c.l.b16 %v711
      %v780 = vunpack.c.l.b16 %v712
      %v781 = vunpack.c.l.b16 %v713
      %v782 = vunpack.c.l.b16 %v714
      %v783 = vunpack.c.l.b16 %v715
      %v784 = vunpack.c.l.b16 %v716
      %v785 = vunpack.c.l.b16 %v717
      %v786 = vunpack.c.l.b16 %v718
      %v787 = vunpack.c.l.b16 %v719
      %v788 = vunpack.c.l.b16 %v720
      %v789 = vunpack.c.l.b16 %v721
      %v790 = vunpack.c.l.b16 %v722
      %v791 = vunpack.c.l.b16 %v723
      %v792 = vunpack.c.l.b16 %v724
      %v793 = vunpack.c.l.b16 %v725
      %v794 = vunpack.c.l.b16 %v726
      %v795 = vunpack.c.l.b16 %v727
      %v796 = vunpack.c.l.b16 %v728
      %v797 = vunpack.c.l.b16 %v729
      %v798 = vunpack.c.l.b16 %v730
      %v799 = vpack.c.b16 %v768, %v767
      %v800 = vpack.c.b16 %v770, %v769
      %v801 = vpack.c.b16 %v772, %v771
      %v802 = vpack.c.b16 %v774, %v773
      %v803 = vpack.c.b16 %v776, %v775
      %v804 = vpack.c.b16 %v778, %v777
      %v805 = vpack.c.b16 %v780, %v779
      %v806 = vpack.c.b16 %v782, %v781
      %v807 = vpack.c.b16 %v784, %v783
      %v808 = vpack.c.b16 %v786, %v785
      %v809 = vpack.c.b16 %v788, %v787
      %v810 = vpack.c.b16 %v790, %v789
      %v811 = vpack.c.b16 %v792, %v791
      %v812 = vpack.c.b16 %v794, %v793
      %v813 = vpack.c.b16 %v796, %v795
      %v814 = vpack.c.b16 %v798, %v797
      %831 = vmatpush.bf16.msra.mxu0 %v806
      %832 = vmatpush.bf16.msra.mxu0 %v805
      %833 = vmatpush.bf16.msra.mxu0 %v804
      %834 = vmatpush.bf16.msra.mxu0 %v803
      %835 = vmatpush.bf16.msra.mxu0 %v802
      %836 = vmatpush.bf16.msra.mxu0 %v801
      %837 = vmatpush.bf16.msra.mxu0 %v800
      %838 = vmatpush.bf16.msra.mxu0 %v799
      %839 = vmatmul.bf16.gmra.mxu0 %v697
      %v840 = vpop.f32.mrf.mxu0
      %v841 = vadd.f32 %v733, %v840
      %v842 = vpop.f32.mrf.mxu0
      %843 = vdwg.mxu0
      %844 = vmatpush.bf16.msra.mxu0 %v814
      %845 = vmatpush.bf16.msra.mxu0 %v813
      %846 = vmatpush.bf16.msra.mxu0 %v812
      %847 = vmatpush.bf16.msra.mxu0 %v811
      %848 = vmatpush.bf16.msra.mxu0 %v810
      %849 = vmatpush.bf16.msra.mxu0 %v809
      %850 = vmatpush.bf16.msra.mxu0 %v808
      %851 = vmatpush.bf16.msra.mxu0 %v807
      %852 = vmatmul.bf16.gmra.mxu0 %v698
      %v853 = vpop.f32.mrf.mxu0
      %v854 = vadd.f32 %v841, %v853
      %v855 = vpop.f32.mrf.mxu0
      %856 = vdwg.mxu0
      %v857 = vmax.f32 %v854, 0.0
      %v858 = vpack.c.bf16 %v857, %v857
      %v859 = vld [vmem:[%s5] sm:$0xf]
      %v860 = vld [vmem:[%s5 + $0x4] sm:$0xf]
      %v861 = vld [vmem:[%s5 + $0x8] sm:$0xf]
      %v862 = vld [vmem:[%s5 + $0xc] sm:$0xf]
      %v863 = vld [vmem:[%s5 + $0x10] sm:$0xf]
      %v864 = vld [vmem:[%s5 + $0x14] sm:$0xf]
      %v865 = vld [vmem:[%s5 + $0x18] sm:$0xf]
      %v866 = vld [vmem:[%s5 + $0x1c] sm:$0xf]
      %v867 = vld [vmem:[%s5 + $0x20] sm:$0xf]
      %v868 = vld [vmem:[%s5 + $0x24] sm:$0xf]
      %v869 = vld [vmem:[%s5 + $0x28] sm:$0xf]
      %v870 = vld [vmem:[%s5 + $0x2c] sm:$0xf]
      %v871 = vld [vmem:[%s5 + $0x30] sm:$0xf]
      %v872 = vld [vmem:[%s5 + $0x34] sm:$0xf]
      %v873 = vld [vmem:[%s5 + $0x38] sm:$0xf]
      %v874 = vld [vmem:[%s5 + $0x3c] sm:$0xf]
      %v875 = vld [vmem:[%s6] sm:$0x1]
      %v877 = vperm.slane %v875, 0
      %v895 = vunpack.c.l.b16 %v859
      %v896 = vunpack.c.l.b16 %v860
      %v897 = vunpack.c.l.b16 %v861
      %v898 = vunpack.c.l.b16 %v862
      %v899 = vunpack.c.l.b16 %v863
      %v900 = vunpack.c.l.b16 %v864
      %v901 = vunpack.c.l.b16 %v865
      %v902 = vunpack.c.l.b16 %v866
      %v903 = vunpack.c.l.b16 %v867
      %v904 = vunpack.c.l.b16 %v868
      %v905 = vunpack.c.l.b16 %v869
      %v906 = vunpack.c.l.b16 %v870
      %v907 = vunpack.c.l.b16 %v871
      %v908 = vunpack.c.l.b16 %v872
      %v909 = vunpack.c.l.b16 %v873
      %v910 = vunpack.c.l.b16 %v874
      %v911 = vpack.c.b16 %v896, %v895
      %v912 = vpack.c.b16 %v898, %v897
      %v913 = vpack.c.b16 %v900, %v899
      %v914 = vpack.c.b16 %v902, %v901
      %v915 = vpack.c.b16 %v904, %v903
      %v916 = vpack.c.b16 %v906, %v905
      %v917 = vpack.c.b16 %v908, %v907
      %v918 = vpack.c.b16 %v910, %v909
      %927 = vmatpush.bf16.msra.mxu0 %v918
      %928 = vmatpush.bf16.msra.mxu0 %v917
      %929 = vmatpush.bf16.msra.mxu0 %v916
      %930 = vmatpush.bf16.msra.mxu0 %v915
      %931 = vmatpush.bf16.msra.mxu0 %v914
      %932 = vmatpush.bf16.msra.mxu0 %v913
      %933 = vmatpush.bf16.msra.mxu0 %v912
      %934 = vmatpush.bf16.msra.mxu0 %v911
      %935 = vmatmul.bf16.gmra.mxu0 %v858
      %v936 = vpop.f32.mrf.mxu0
      %v937 = vadd.f32 %v877, %v936
      %v938 = vpop.f32.mrf.mxu0
      %939 = vdwg.mxu0
      %v940 = vpack.c.bf16 %v937, %v937
      %v941 = vld [vmem:[%s7] sm:$0xf]
      %v942 = vld [vmem:[%s7 + $0x4] sm:$0xf]
      %v943 = vld [vmem:[%s7 + $0x8] sm:$0xf]
      %v944 = vld [vmem:[%s7 + $0xc] sm:$0xf]
      %v945 = vld [vmem:[%s7 + $0x10] sm:$0xf]
      %v946 = vld [vmem:[%s7 + $0x14] sm:$0xf]
      %v947 = vld [vmem:[%s7 + $0x18] sm:$0xf]
      %v948 = vld [vmem:[%s7 + $0x1c] sm:$0xf]
      %v949 = vld [vmem:[%s7 + $0x20] sm:$0xf]
      %v950 = vld [vmem:[%s7 + $0x24] sm:$0xf]
      %v951 = vld [vmem:[%s7 + $0x28] sm:$0xf]
      %v952 = vld [vmem:[%s7 + $0x2c] sm:$0xf]
      %v953 = vld [vmem:[%s7 + $0x30] sm:$0xf]
      %v954 = vld [vmem:[%s7 + $0x34] sm:$0xf]
      %v955 = vld [vmem:[%s7 + $0x38] sm:$0xf]
      %v956 = vld [vmem:[%s7 + $0x3c] sm:$0xf]
      %v957 = vld [vmem:[%s8] sm:$0x1]
      %v959 = vperm.slane %v957, 0
      %v977 = vunpack.c.l.b16 %v941
      %v978 = vunpack.c.l.b16 %v942
      %v979 = vunpack.c.l.b16 %v943
      %v980 = vunpack.c.l.b16 %v944
      %v981 = vunpack.c.l.b16 %v945
      %v982 = vunpack.c.l.b16 %v946
      %v983 = vunpack.c.l.b16 %v947
      %v984 = vunpack.c.l.b16 %v948
      %v985 = vunpack.c.l.b16 %v949
      %v986 = vunpack.c.l.b16 %v950
      %v987 = vunpack.c.l.b16 %v951
      %v988 = vunpack.c.l.b16 %v952
      %v989 = vunpack.c.l.b16 %v953
      %v990 = vunpack.c.l.b16 %v954
      %v991 = vunpack.c.l.b16 %v955
      %v992 = vunpack.c.l.b16 %v956
      %v993 = vpack.c.b16 %v978, %v977
      %v994 = vpack.c.b16 %v980, %v979
      %v995 = vpack.c.b16 %v982, %v981
      %v996 = vpack.c.b16 %v984, %v983
      %v997 = vpack.c.b16 %v986, %v985
      %v998 = vpack.c.b16 %v988, %v987
      %v999 = vpack.c.b16 %v990, %v989
      %v1000 = vpack.c.b16 %v992, %v991
      %1009 = vmatpush.bf16.msra.mxu0 %v1000
      %1010 = vmatpush.bf16.msra.mxu0 %v999
      %1011 = vmatpush.bf16.msra.mxu0 %v998
      %1012 = vmatpush.bf16.msra.mxu0 %v997
      %1013 = vmatpush.bf16.msra.mxu0 %v996
      %1014 = vmatpush.bf16.msra.mxu0 %v995
      %1015 = vmatpush.bf16.msra.mxu0 %v994
      %1016 = vmatpush.bf16.msra.mxu0 %v993
      %1017 = vmatmul.bf16.gmra.mxu0 %v940
      %v1018 = vpop.f32.mrf.mxu0
      %v1019 = vadd.f32 %v959, %v1018
      %v1020 = vpop.f32.mrf.mxu0
      %1021 = vdwg.mxu0
      %v1022 = vmax.f32 %v1019, 0.0
      %v1023 = vpack.c.bf16 %v1022, %v1022
      %v1024 = vld [vmem:[%s9] sm:$0xff]
      %v1025 = vld [vmem:[%s9 + $0x8] sm:$0xff]
      %v1026 = vld [vmem:[%s9 + $0x10] sm:$0xff]
      %v1027 = vld [vmem:[%s9 + $0x18] sm:$0xff]
      %v1028 = vld [vmem:[%s9 + $0x20] sm:$0xff]
      %v1029 = vld [vmem:[%s9 + $0x28] sm:$0xff]
      %v1030 = vld [vmem:[%s9 + $0x30] sm:$0xff]
      %v1031 = vld [vmem:[%s9 + $0x38] sm:$0xff]
      %v1032 = vld [vmem:[%s9 + $0x40] sm:$0xff]
      %v1033 = vld [vmem:[%s9 + $0x48] sm:$0xff]
      %v1034 = vld [vmem:[%s9 + $0x50] sm:$0xff]
      %v1035 = vld [vmem:[%s9 + $0x58] sm:$0xff]
      %v1036 = vld [vmem:[%s9 + $0x60] sm:$0xff]
      %v1037 = vld [vmem:[%s9 + $0x68] sm:$0xff]
      %v1038 = vld [vmem:[%s9 + $0x70] sm:$0xff]
      %v1039 = vld [vmem:[%s9 + $0x78] sm:$0xff]
      %v1040 = vld [vmem:[%s10] sm:$0x3]
      %v1042 = vperm.slane %v1040, 0
      %v1043 = vperm.slane %v1040, 1
      %v1062 = vunpack.c.l.b16 %v1024
      %v1063 = vunpack.c.h.b16 %v1024
      %v1064 = vunpack.c.l.b16 %v1025
      %v1065 = vunpack.c.h.b16 %v1025
      %v1066 = vunpack.c.l.b16 %v1026
      %v1067 = vunpack.c.h.b16 %v1026
      %v1068 = vunpack.c.l.b16 %v1027
      %v1069 = vunpack.c.h.b16 %v1027
      %v1070 = vunpack.c.l.b16 %v1028
      %v1071 = vunpack.c.h.b16 %v1028
      %v1072 = vunpack.c.l.b16 %v1029
      %v1073 = vunpack.c.h.b16 %v1029
      %v1074 = vunpack.c.l.b16 %v1030
      %v1075 = vunpack.c.h.b16 %v1030
      %v1076 = vunpack.c.l.b16 %v1031
      %v1077 = vunpack.c.h.b16 %v1031
      %v1078 = vunpack.c.l.b16 %v1032
      %v1079 = vunpack.c.h.b16 %v1032
      %v1080 = vunpack.c.l.b16 %v1033
      %v1081 = vunpack.c.h.b16 %v1033
      %v1082 = vunpack.c.l.b16 %v1034
      %v1083 = vunpack.c.h.b16 %v1034
      %v1084 = vunpack.c.l.b16 %v1035
      %v1085 = vunpack.c.h.b16 %v1035
      %v1086 = vunpack.c.l.b16 %v1036
      %v1087 = vunpack.c.h.b16 %v1036
      %v1088 = vunpack.c.l.b16 %v1037
      %v1089 = vunpack.c.h.b16 %v1037
      %v1090 = vunpack.c.l.b16 %v1038
      %v1091 = vunpack.c.h.b16 %v1038
      %v1092 = vunpack.c.l.b16 %v1039
      %v1093 = vunpack.c.h.b16 %v1039
      %v1094 = vpack.c.b16 %v1064, %v1062
      %v1095 = vpack.c.b16 %v1065, %v1063
      %v1096 = vpack.c.b16 %v1068, %v1066
      %v1097 = vpack.c.b16 %v1069, %v1067
      %v1098 = vpack.c.b16 %v1072, %v1070
      %v1099 = vpack.c.b16 %v1073, %v1071
      %v1100 = vpack.c.b16 %v1076, %v1074
      %v1101 = vpack.c.b16 %v1077, %v1075
      %v1102 = vpack.c.b16 %v1080, %v1078
      %v1103 = vpack.c.b16 %v1081, %v1079
      %v1104 = vpack.c.b16 %v1084, %v1082
      %v1105 = vpack.c.b16 %v1085, %v1083
      %v1106 = vpack.c.b16 %v1088, %v1086
      %v1107 = vpack.c.b16 %v1089, %v1087
      %v1108 = vpack.c.b16 %v1092, %v1090
      %v1109 = vpack.c.b16 %v1093, %v1091
      %1126 = vmatpush.bf16.msra.mxu0 %v1108
      %1127 = vmatpush.bf16.msra.mxu0 %v1106
      %1128 = vmatpush.bf16.msra.mxu0 %v1104
      %1129 = vmatpush.bf16.msra.mxu0 %v1102
      %1130 = vmatpush.bf16.msra.mxu0 %v1100
      %1131 = vmatpush.bf16.msra.mxu0 %v1098
      %1132 = vmatpush.bf16.msra.mxu0 %v1096
      %1133 = vmatpush.bf16.msra.mxu0 %v1094
      %1134 = vmatmul.bf16.gmra.mxu0 %v1023
      %v1135 = vpop.f32.mrf.mxu0
      %v1136 = vadd.f32 %v1042, %v1135
      %v1137 = vpop.f32.mrf.mxu0
      %1138 = vdwg.mxu0
      %1139 = vmatpush.bf16.msra.mxu0 %v1109
      %1140 = vmatpush.bf16.msra.mxu0 %v1107
      %1141 = vmatpush.bf16.msra.mxu0 %v1105
      %1142 = vmatpush.bf16.msra.mxu0 %v1103
      %1143 = vmatpush.bf16.msra.mxu0 %v1101
      %1144 = vmatpush.bf16.msra.mxu0 %v1099
      %1145 = vmatpush.bf16.msra.mxu0 %v1097
      %1146 = vmatpush.bf16.msra.mxu0 %v1095
      %1147 = vmatmul.bf16.gmra.mxu0 %v1023
      %v1148 = vpop.f32.mrf.mxu0
      %v1149 = vadd.f32 %v1043, %v1148
      %v1150 = vpop.f32.mrf.mxu0
      %1151 = vdwg.mxu0
      %v1152 = vmax.f32 %v1136, 0.0
      %v1153 = vmax.f32 %v1149, 0.0
      %v1154 = vpack.c.bf16 %v1152, %v1152
      %v1155 = vpack.c.bf16 %v1153, %v1153
      %v1156 = vld [vmem:[%s11] sm:$0xff]
      %v1157 = vld [vmem:[%s11 + $0x8] sm:$0xff]
      %v1158 = vld [vmem:[%s11 + $0x10] sm:$0xff]
      %v1159 = vld [vmem:[%s11 + $0x18] sm:$0xff]
      %v1160 = vld [vmem:[%s11 + $0x20] sm:$0xff]
      %v1161 = vld [vmem:[%s11 + $0x28] sm:$0xff]
      %v1162 = vld [vmem:[%s11 + $0x30] sm:$0xff]
      %v1163 = vld [vmem:[%s11 + $0x38] sm:$0xff]
      %v1164 = vld [vmem:[%s11 + $0x40] sm:$0xff]
      %v1165 = vld [vmem:[%s11 + $0x48] sm:$0xff]
      %v1166 = vld [vmem:[%s11 + $0x50] sm:$0xff]
      %v1167 = vld [vmem:[%s11 + $0x58] sm:$0xff]
      %v1168 = vld [vmem:[%s11 + $0x60] sm:$0xff]
      %v1169 = vld [vmem:[%s11 + $0x68] sm:$0xff]
      %v1170 = vld [vmem:[%s11 + $0x70] sm:$0xff]
      %v1171 = vld [vmem:[%s11 + $0x78] sm:$0xff]
      %v1172 = vld [vmem:[%s11 + $0x80] sm:$0xff]
      %v1173 = vld [vmem:[%s11 + $0x88] sm:$0xff]
      %v1174 = vld [vmem:[%s11 + $0x90] sm:$0xff]
      %v1175 = vld [vmem:[%s11 + $0x98] sm:$0xff]
      %v1176 = vld [vmem:[%s11 + $0xa0] sm:$0xff]
      %v1177 = vld [vmem:[%s11 + $0xa8] sm:$0xff]
      %v1178 = vld [vmem:[%s11 + $0xb0] sm:$0xff]
      %v1179 = vld [vmem:[%s11 + $0xb8] sm:$0xff]
      %v1180 = vld [vmem:[%s11 + $0xc0] sm:$0xff]
      %v1181 = vld [vmem:[%s11 + $0xc8] sm:$0xff]
      %v1182 = vld [vmem:[%s11 + $0xd0] sm:$0xff]
      %v1183 = vld [vmem:[%s11 + $0xd8] sm:$0xff]
      %v1184 = vld [vmem:[%s11 + $0xe0] sm:$0xff]
      %v1185 = vld [vmem:[%s11 + $0xe8] sm:$0xff]
      %v1186 = vld [vmem:[%s11 + $0xf0] sm:$0xff]
      %v1187 = vld [vmem:[%s11 + $0xf8] sm:$0xff]
      %v1188 = vld [vmem:[%s12] sm:$0x3]
      %v1190 = vperm.slane %v1188, 0
      %v1191 = vperm.slane %v1188, 1
      %v1226 = vunpack.c.l.b16 %v1156
      %v1227 = vunpack.c.h.b16 %v1156
      %v1228 = vunpack.c.l.b16 %v1157
      %v1229 = vunpack.c.h.b16 %v1157
      %v1230 = vunpack.c.l.b16 %v1158
      %v1231 = vunpack.c.h.b16 %v1158
      %v1232 = vunpack.c.l.b16 %v1159
      %v1233 = vunpack.c.h.b16 %v1159
      %v1234 = vunpack.c.l.b16 %v1160
      %v1235 = vunpack.c.h.b16 %v1160
      %v1236 = vunpack.c.l.b16 %v1161
      %v1237 = vunpack.c.h.b16 %v1161
      %v1238 = vunpack.c.l.b16 %v1162
      %v1239 = vunpack.c.h.b16 %v1162
      %v1240 = vunpack.c.l.b16 %v1163
      %v1241 = vunpack.c.h.b16 %v1163
      %v1242 = vunpack.c.l.b16 %v1164
      %v1243 = vunpack.c.h.b16 %v1164
      %v1244 = vunpack.c.l.b16 %v1165
      %v1245 = vunpack.c.h.b16 %v1165
      %v1246 = vunpack.c.l.b16 %v1166
      %v1247 = vunpack.c.h.b16 %v1166
      %v1248 = vunpack.c.l.b16 %v1167
      %v1249 = vunpack.c.h.b16 %v1167
      %v1250 = vunpack.c.l.b16 %v1168
      %v1251 = vunpack.c.h.b16 %v1168
      %v1252 = vunpack.c.l.b16 %v1169
      %v1253 = vunpack.c.h.b16 %v1169
      %v1254 = vunpack.c.l.b16 %v1170
      %v1255 = vunpack.c.h.b16 %v1170
      %v1256 = vunpack.c.l.b16 %v1171
      %v1257 = vunpack.c.h.b16 %v1171
      %v1258 = vunpack.c.l.b16 %v1172
      %v1259 = vunpack.c.h.b16 %v1172
      %v1260 = vunpack.c.l.b16 %v1173
      %v1261 = vunpack.c.h.b16 %v1173
      %v1262 = vunpack.c.l.b16 %v1174
      %v1263 = vunpack.c.h.b16 %v1174
      %v1264 = vunpack.c.l.b16 %v1175
      %v1265 = vunpack.c.h.b16 %v1175
      %v1266 = vunpack.c.l.b16 %v1176
      %v1267 = vunpack.c.h.b16 %v1176
      %v1268 = vunpack.c.l.b16 %v1177
      %v1269 = vunpack.c.h.b16 %v1177
      %v1270 = vunpack.c.l.b16 %v1178
      %v1271 = vunpack.c.h.b16 %v1178
      %v1272 = vunpack.c.l.b16 %v1179
      %v1273 = vunpack.c.h.b16 %v1179
      %v1274 = vunpack.c.l.b16 %v1180
      %v1275 = vunpack.c.h.b16 %v1180
      %v1276 = vunpack.c.l.b16 %v1181
      %v1277 = vunpack.c.h.b16 %v1181
      %v1278 = vunpack.c.l.b16 %v1182
      %v1279 = vunpack.c.h.b16 %v1182
      %v1280 = vunpack.c.l.b16 %v1183
      %v1281 = vunpack.c.h.b16 %v1183
      %v1282 = vunpack.c.l.b16 %v1184
      %v1283 = vunpack.c.h.b16 %v1184
      %v1284 = vunpack.c.l.b16 %v1185
      %v1285 = vunpack.c.h.b16 %v1185
      %v1286 = vunpack.c.l.b16 %v1186
      %v1287 = vunpack.c.h.b16 %v1186
      %v1288 = vunpack.c.l.b16 %v1187
      %v1289 = vunpack.c.h.b16 %v1187
      %v1290 = vpack.c.b16 %v1228, %v1226
      %v1291 = vpack.c.b16 %v1229, %v1227
      %v1292 = vpack.c.b16 %v1232, %v1230
      %v1293 = vpack.c.b16 %v1233, %v1231
      %v1294 = vpack.c.b16 %v1236, %v1234
      %v1295 = vpack.c.b16 %v1237, %v1235
      %v1296 = vpack.c.b16 %v1240, %v1238
      %v1297 = vpack.c.b16 %v1241, %v1239
      %v1298 = vpack.c.b16 %v1244, %v1242
      %v1299 = vpack.c.b16 %v1245, %v1243
      %v1300 = vpack.c.b16 %v1248, %v1246
      %v1301 = vpack.c.b16 %v1249, %v1247
      %v1302 = vpack.c.b16 %v1252, %v1250
      %v1303 = vpack.c.b16 %v1253, %v1251
      %v1304 = vpack.c.b16 %v1256, %v1254
      %v1305 = vpack.c.b16 %v1257, %v1255
      %v1306 = vpack.c.b16 %v1260, %v1258
      %v1307 = vpack.c.b16 %v1261, %v1259
      %v1308 = vpack.c.b16 %v1264, %v1262
      %v1309 = vpack.c.b16 %v1265, %v1263
      %v1310 = vpack.c.b16 %v1268, %v1266
      %v1311 = vpack.c.b16 %v1269, %v1267
      %v1312 = vpack.c.b16 %v1272, %v1270
      %v1313 = vpack.c.b16 %v1273, %v1271
      %v1314 = vpack.c.b16 %v1276, %v1274
      %v1315 = vpack.c.b16 %v1277, %v1275
      %v1316 = vpack.c.b16 %v1280, %v1278
      %v1317 = vpack.c.b16 %v1281, %v1279
      %v1318 = vpack.c.b16 %v1284, %v1282
      %v1319 = vpack.c.b16 %v1285, %v1283
      %v1320 = vpack.c.b16 %v1288, %v1286
      %v1321 = vpack.c.b16 %v1289, %v1287
      %1354 = vmatpush.bf16.msra.mxu0 %v1304
      %1355 = vmatpush.bf16.msra.mxu0 %v1302
      %1356 = vmatpush.bf16.msra.mxu0 %v1300
      %1357 = vmatpush.bf16.msra.mxu0 %v1298
      %1358 = vmatpush.bf16.msra.mxu0 %v1296
      %1359 = vmatpush.bf16.msra.mxu0 %v1294
      %1360 = vmatpush.bf16.msra.mxu0 %v1292
      %1361 = vmatpush.bf16.msra.mxu0 %v1290
      %1362 = vmatmul.bf16.gmra.mxu0 %v1154
      %v1363 = vpop.f32.mrf.mxu0
      %v1364 = vadd.f32 %v1190, %v1363
      %v1365 = vpop.f32.mrf.mxu0
      %1366 = vdwg.mxu0
      %1367 = vmatpush.bf16.msra.mxu0 %v1320
      %1368 = vmatpush.bf16.msra.mxu0 %v1318
      %1369 = vmatpush.bf16.msra.mxu0 %v1316
      %1370 = vmatpush.bf16.msra.mxu0 %v1314
      %1371 = vmatpush.bf16.msra.mxu0 %v1312
      %1372 = vmatpush.bf16.msra.mxu0 %v1310
      %1373 = vmatpush.bf16.msra.mxu0 %v1308
      %1374 = vmatpush.bf16.msra.mxu0 %v1306
      %1375 = vmatmul.bf16.gmra.mxu0 %v1155
      %v1376 = vpop.f32.mrf.mxu0
      %v1377 = vadd.f32 %v1364, %v1376
      %v1378 = vpop.f32.mrf.mxu0
      %1379 = vdwg.mxu0
      %1380 = vmatpush.bf16.msra.mxu0 %v1305
      %1381 = vmatpush.bf16.msra.mxu0 %v1303
      %1382 = vmatpush.bf16.msra.mxu0 %v1301
      %1383 = vmatpush.bf16.msra.mxu0 %v1299
      %1384 = vmatpush.bf16.msra.mxu0 %v1297
      %1385 = vmatpush.bf16.msra.mxu0 %v1295
      %1386 = vmatpush.bf16.msra.mxu0 %v1293
      %1387 = vmatpush.bf16.msra.mxu0 %v1291
      %1388 = vmatmul.bf16.gmra.mxu0 %v1154
      %v1389 = vpop.f32.mrf.mxu0
      %v1390 = vadd.f32 %v1191, %v1389
      %v1391 = vpop.f32.mrf.mxu0
      %1392 = vdwg.mxu0
      %1393 = vmatpush.bf16.msra.mxu0 %v1321
      %1394 = vmatpush.bf16.msra.mxu0 %v1319
      %1395 = vmatpush.bf16.msra.mxu0 %v1317
      %1396 = vmatpush.bf16.msra.mxu0 %v1315
      %1397 = vmatpush.bf16.msra.mxu0 %v1313
      %1398 = vmatpush.bf16.msra.mxu0 %v1311
      %1399 = vmatpush.bf16.msra.mxu0 %v1309
      %1400 = vmatpush.bf16.msra.mxu0 %v1307
      %1401 = vmatmul.bf16.gmra.mxu0 %v1155
      %v1402 = vpop.f32.mrf.mxu0
      %v1403 = vadd.f32 %v1390, %v1402
      %v1404 = vpop.f32.mrf.mxu0
      %1405 = vdwg.mxu0
      %v1406 = vpack.c.bf16 %v1403, %v1377
      %1407 = vst [vmem:[%s440] sm:$0xff] %v1406
      %p1408 = scmp.lt.s32.totalorder %s24, 2
      %s1409 = scalar_select %p1408, %s24, 2
      %s1410 = smul.addr %s1409, 2
      %s1411 = smul.addr %s1410, 4
      %s1412 = scalar_lea.vmem %s13, %s1411
      // Predicated region
      $region73: #{nn_autoencoder_forward.1} parent=71 // pred_check
        %p1413 = pneg %p320
      $region74: #{nn_autoencoder_forward.1} parent=71 // pred_check_branch
        %1415 = sbr.rel (%p1413) target = $region76
      $region75: #{nn_autoencoder_forward.1} parent=71 // pred_region
        _
      $region76: #{nn_autoencoder_forward.1} parent=71 // pred_fallthru
        _
    $region72: #{nn_autoencoder_forward.1} parent=5 // pred_fallthru
      _
    %p1416 = scmp.le.s32.totalorder 2, %s19
    // Predicated region
    $region77: #{nn_autoencoder_forward.1} parent=5 // pred_check
      %p1417 = pneg %p1416
    $region78: #{nn_autoencoder_forward.1} parent=5 // pred_check_branch
      %1419 = sbr.rel (%p1417) target = $region80
    $region79: #{nn_autoencoder_forward.1} parent=5 // pred_region
      %s1420 = ssub.s32 %s19, 2
      // Predicated region
      $region81: #{nn_autoencoder_forward.1} parent=79 // pred_check
        %p1421 = pneg %p326
      $region82: #{nn_autoencoder_forward.1} parent=79 // pred_check_branch
        %1423 = sbr.rel (%p1421) target = $region84
      $region83: #{nn_autoencoder_forward.1} parent=79 // pred_region
        %p1424 = scmp.lt.s32.totalorder %s25, 2
        %s1425 = scalar_select %p1424, %s25, 2
        %s1426 = smul.addr %s1425, 2
        %s1427 = smul.addr %s1426, 4
        %s1428 = scalar_lea.vmem %s13, %s1427
      $region84: #{nn_autoencoder_forward.1} parent=79 // pred_fallthru
        _
    $region80: #{nn_autoencoder_forward.1} parent=5 // pred_fallthru
      _
  $region6: #{nn_autoencoder_forward.1} parent=0 // loop_footer
    %s23 = sadd.s32 1, %s19
  $region7: #{nn_autoencoder_forward.1} parent=0 // loop_footer_branch
    %18 = sbr.rel target = $region3
  $region8: #{nn_autoencoder_forward.1} parent=0 // loop_exit
    _

</llo_original>
